<compile_context>
chip_gen: v5e
topology: v5e:2x2
jax: 0.10.0
libtpu: 0.0.40
codegen_flags: <defaults>
</compile_context>

<pallas_src>
import jax
import jax.numpy as jnp
from jax.experimental import pallas as pl
from jax.experimental.pallas import tpu as pltpu


def _biaffine_kernel(xl_ref, xr_ref, lin_l_ref, lin_r_ref, mat_ref,
                     out_ref, t_ref):
    """Computes one (BT, TL, TR) output tile.

    xl_ref   : (BT, TL, D_l)  left features
    xr_ref   : (BT, TR, D_r)  right features
    lin_l_ref: (BT, TL, 1)    linear_l(x_l) + bias + b_l + b_r  (f32)
    lin_r_ref: (BT, 1,  TR)   linear_r(x_r) (no bias)           (f32)
    mat_ref  : (D_l, D_r)     bilinear matrix (resident across grid)
    out_ref  : (BT, TL, TR)
    t_ref    : (BT, TL, D_r)  VMEM cache of x_l @ M, reused over the S_r axis
    """
    # First matmul depends only on the (batch, S_l) tile: compute it once per
    # sweep of the innermost (S_r) grid axis and cache it in VMEM scratch.
    @pl.when(pl.program_id(2) == 0)
    def _():
        bt, tl, dl = xl_ref.shape
        xl = xl_ref[...].reshape(bt * tl, dl)        # good MXU row fill
        t = jnp.dot(xl, mat_ref[...], preferred_element_type=jnp.float32)
        t_ref[...] = t.reshape(bt, tl, mat_ref.shape[1]).astype(t_ref.dtype)

    # Second (batched) matmul contracts the LAST dim of both operands: no
    # transposed copy of x_r is materialized.
    s = jnp.einsum("bqd,bkd->bqk", t_ref[...], xr_ref[...],
                   preferred_element_type=jnp.float32)
    # Bias / linear terms: cheap VPU broadcast-adds.
    s = s + lin_l_ref[...] + lin_r_ref[...]
    out_ref[...] = s.astype(out_ref.dtype)


def _vmem_budget():
    """Generation-aware (tile_budget, vmem_limit_bytes)."""
    cap = 64 * 1024 * 1024                       # conservative fallback (v7x)
    try:
        info = pltpu.get_tpu_info()
        reported = int(getattr(info, "vmem_capacity_bytes", cap))
        if reported > 0:
            cap = reported
    except Exception:
        pass
    tile_budget = max(16 * 1024 * 1024, int(cap * 0.45))
    vmem_limit = max(32 * 1024 * 1024, int(cap * 0.75))
    return tile_budget, vmem_limit


def _shrink(t, align):
    """Shrink a tile dim, keeping it a multiple of `align` (or at minimum)."""
    if t <= align:
        return t
    nt = t // 2 if t % align == 0 else t         # non-aligned => was full extent
    nt = (nt // align) * align
    return max(align, nt)


def _pick_tiles(B, S_l, S_r, D_l, D_r, in_sz, out_sz, budget):
    """Choose (BT, TL, TR): legal block dims whose working set fits `budget`."""
    # TL is a second-to-last block dim (x_l / out): multiple of 8, or full S_l.
    TL = S_l if S_l <= 512 else 512
    # TR is the output lane dim (and x_r sublane dim): mult of 128, or full S_r.
    TR = S_r if S_r <= 2048 else 2048

    # Pack batch elements only when the whole (S_l, S_r) plane is one block and
    # S_l is a multiple of 8 (so the in-kernel flatten stays a pure view).
    BT = 1
    if TL == S_l and TR == S_r and S_l % 8 == 0:
        BT = min(B, max(1, 512 // max(S_l, 1)))
        # Keep >= 2 steps on the parallel axes so both v7x TensorCores get work.
        if BT > 1 and pl.cdiv(S_l, TL) == 1 and B >= 2:
            BT = min(BT, max(1, B // 2))

    def vmem_bytes(bt, tl, tr):
        xl = bt * tl * D_l * in_sz
        xr = bt * tr * D_r * in_sz
        ll = bt * tl * 128 * 4            # (bt, tl, 1) f32, lane-padded
        lr = bt * 8 * tr * 4              # (bt, 1, tr) f32, sublane-padded
        mat = D_l * D_r * in_sz
        out = bt * tl * tr * out_sz
        t_cache = bt * tl * D_r * in_sz   # scratch, single-buffered
        return 2 * (xl + xr + ll + lr + mat + out) + t_cache

    while vmem_bytes(BT, TL, TR) > budget:
        if BT > 1:
            BT = max(1, BT // 2)
        elif TL > 128 and _shrink(TL, 8) != TL:
            TL = _shrink(TL, 8)                  # keep TR (output lanes) wide
        elif TR > 512 and _shrink(TR, 128) != TR:
            TR = _shrink(TR, 128)
        elif _shrink(TL, 8) != TL:
            TL = _shrink(TL, 8)
        elif _shrink(TR, 128) != TR:
            TR = _shrink(TR, 128)
        else:
            break                                # cannot shrink further
    return BT, TL, TR


def biaffine(x_l, x_r, matrix, bias, w_l=None, b_l=None, w_r=None, b_r=None,
             *, use_linears=True, out_dtype=jnp.float32, cast_to_bf16=False,
             _allow_swap=True):
    """x_l: [B, S_l, D_l], x_r: [B, S_r, D_r] -> [B, S_l, S_r] (out_dtype)."""
    B, S_l, D_l = x_l.shape
    Bx, S_r, D_r = x_r.shape
    assert Bx == B and matrix.shape == (D_l, D_r)

    # Lane-dense output stores: if S_r is narrow but S_l is wide, compute the
    # transposed score in-kernel and swap back (layout plumbing, not compute).
    if _allow_swap and S_r < 128 <= S_l:
        out_t = biaffine(x_r, x_l, jnp.asarray(matrix).T, bias,
                         w_r, b_r, w_l, b_l,
                         use_linears=use_linears, out_dtype=out_dtype,
                         cast_to_bf16=cast_to_bf16, _allow_swap=False)
        return jnp.swapaxes(out_t, 1, 2)

    cdt = jnp.promote_types(x_l.dtype, x_r.dtype)
    if cast_to_bf16 and cdt == jnp.float32:
        cdt = jnp.bfloat16                        # MXU-native; f32 accumulation

    xl = x_l.astype(cdt)
    xr = x_r.astype(cdt)
    mat = jnp.asarray(matrix).astype(cdt)

    # Linear/bias terms as tiny f32 side inputs (broadcast-added in-kernel).
    bias_f = jnp.asarray(bias, jnp.float32).reshape(())
    if use_linears:
        wl = jnp.asarray(w_l, jnp.float32).reshape(D_l)
        wr = jnp.asarray(w_r, jnp.float32).reshape(D_r)
        c = (bias_f + jnp.asarray(b_l, jnp.float32).reshape(())
             + jnp.asarray(b_r, jnp.float32).reshape(()))
        lin_l = jnp.einsum("bld,d->bl", x_l.astype(jnp.float32), wl)[:, :, None] + c
        lin_r = jnp.einsum("bkd,d->bk", x_r.astype(jnp.float32), wr)[:, None, :]
    else:
        lin_l = jnp.full((B, S_l, 1), bias_f, jnp.float32)
        lin_r = jnp.zeros((B, 1, S_r), jnp.float32)
    lin_l = lin_l.astype(jnp.float32)
    lin_r = lin_r.astype(jnp.float32)

    in_sz = jnp.dtype(cdt).itemsize
    out_sz = jnp.dtype(out_dtype).itemsize
    tile_budget, vmem_limit = _vmem_budget()
    BT, TL, TR = _pick_tiles(B, S_l, S_r, D_l, D_r, in_sz, out_sz, tile_budget)

    grid = (pl.cdiv(B, BT), pl.cdiv(S_l, TL), pl.cdiv(S_r, TR))

    flops = 2 * B * S_l * D_l * D_r + 2 * B * S_l * S_r * D_r
    bytes_accessed = ((xl.size + xr.size + mat.size) * in_sz
                      + (lin_l.size + lin_r.size) * 4
                      + B * S_l * S_r * out_sz)
    cost = pl.CostEstimate(flops=int(flops), transcendentals=0,
                           bytes_accessed=int(bytes_accessed))

    return pl.pallas_call(
        _biaffine_kernel,
        out_shape=jax.ShapeDtypeStruct((B, S_l, S_r), out_dtype),
        grid=grid,
        in_specs=[
            pl.BlockSpec((BT, TL, D_l), lambda b, i, j: (b, i, 0)),   # x_l
            pl.BlockSpec((BT, TR, D_r), lambda b, i, j: (b, j, 0)),   # x_r
            pl.BlockSpec((BT, TL, 1), lambda b, i, j: (b, i, 0)),     # lin_l
            pl.BlockSpec((BT, 1, TR), lambda b, i, j: (b, 0, j)),     # lin_r
            pl.BlockSpec((D_l, D_r), lambda b, i, j: (0, 0)),         # matrix
        ],
        out_specs=pl.BlockSpec((BT, TL, TR), lambda b, i, j: (b, i, j)),
        scratch_shapes=[pltpu.VMEM((BT, TL, D_r), cdt)],              # t cache
        compiler_params=pltpu.CompilerParams(
            dimension_semantics=("parallel", "parallel", "arbitrary"),
            vmem_limit_bytes=int(vmem_limit)),
        cost_estimate=cost,
    )(xl, xr, lin_l, lin_r, mat)


def biaffine_ref(x_l, x_r, matrix, bias, w_l, b_l, w_r, b_r):
    x_l = x_l.astype(jnp.float32)
    x_r = x_r.astype(jnp.float32)
    x = jnp.einsum("bld,dr->blr", x_l, matrix)
    x = jnp.einsum("blr,bkr->blk", x, x_r) + bias
    lin_l = jnp.einsum("bld,d->bl", x_l, w_l)[:, :, None] + b_l
    lin_r = jnp.einsum("bkd,d->bk", x_r, w_r)[:, None, :] + b_r
    return x + lin_l + lin_r


if __name__ == "__main__":
    B, S_l, S_r = 2, 8, 8
    dim_left, dim_right = 32, 32

    key = jax.random.PRNGKey(0)
    k_xl, k_xr, k_m, k_wl, k_wr, k_bl, k_br, k_xl2, k_xr2 = jax.random.split(key, 9)

    x_l32 = jax.random.normal(k_xl, (B, S_l, dim_left), dtype=jnp.float32)
    x_r32 = jax.random.normal(k_xr, (B, S_r, dim_right), dtype=jnp.float32)

    # matrix: xavier_uniform_ ; bias: 0.0 (as in reset_parameters)
    xav = (6.0 / (dim_left + dim_right)) ** 0.5
    matrix = jax.random.uniform(k_m, (dim_left, dim_right),
                                minval=-xav, maxval=xav, dtype=jnp.float32)
    bias = jnp.zeros((1,), dtype=jnp.float32)

    # nn.Linear(dim, 1): weight ~ U(-1/sqrt(dim), 1/sqrt(dim)), bias likewise
    bnd_l = 1.0 / (dim_left ** 0.5)
    bnd_r = 1.0 / (dim_right ** 0.5)
    w_l = jax.random.uniform(k_wl, (dim_left,), minval=-bnd_l, maxval=bnd_l)
    b_l = jax.random.uniform(k_bl, (1,), minval=-bnd_l, maxval=bnd_l)
    w_r = jax.random.uniform(k_wr, (dim_right,), minval=-bnd_r, maxval=bnd_r)
    b_r = jax.random.uniform(k_br, (1,), minval=-bnd_r, maxval=bnd_r)

    # --- float32 operands: tight check -------------------------------------
    out32 = jax.block_until_ready(
        biaffine(x_l32, x_r32, matrix, bias, w_l, b_l, w_r, b_r))
    ref32 = biaffine_ref(x_l32, x_r32, matrix, bias[0], w_l, b_l[0], w_r, b_r[0])
    assert out32.shape == (B, S_l, S_r)
    assert jnp.allclose(out32, ref32, atol=2e-3, rtol=2e-3), \
        float(jnp.max(jnp.abs(out32 - ref32)))

    # --- bfloat16 operands (preferred on TPU): f32 accumulation in-kernel ---
    x_l16 = x_l32.astype(jnp.bfloat16)
    x_r16 = x_r32.astype(jnp.bfloat16)
    out16 = jax.block_until_ready(
        biaffine(x_l16, x_r16, matrix, bias, w_l, b_l, w_r, b_r))
    ref16 = biaffine_ref(x_l16, x_r16, matrix, bias[0], w_l, b_l[0], w_r, b_r[0])
    assert out16.shape == (B, S_l, S_r)
    assert jnp.allclose(out16, ref16, atol=2e-1, rtol=5e-2), \
        float(jnp.max(jnp.abs(out16 - ref16)))

    # --- small-S_r path (lane-dense transposed tile + wrapper swap-back) ----
    Sw_l, Sw_r = 128, 16
    xw_l = jax.random.normal(k_xl2, (B, Sw_l, dim_left), dtype=jnp.float32)
    xw_r = jax.random.normal(k_xr2, (B, Sw_r, dim_right), dtype=jnp.float32)
    outw = jax.block_until_ready(
        biaffine(xw_l, xw_r, matrix, bias, w_l, b_l, w_r, b_r))
    refw = biaffine_ref(xw_l, xw_r, matrix, bias[0], w_l, b_l[0], w_r, b_r[0])
    assert outw.shape == (B, Sw_l, Sw_r)
    assert jnp.allclose(outw, refw, atol=1e-2, rtol=1e-2), \
        float(jnp.max(jnp.abs(outw - refw)))

    print("KERNEL_OK")
</pallas_src>

<mosaic_0001>
module attributes {stable_mosaic.version = 11 : i64} {
  func.func @_biaffine_kernel(%arg0: i32, %arg1: i32, %arg2: i32, %arg3: memref<1x8x32xf32, #tpu.memory_space<vmem>>, %arg4: memref<1x8x32xf32, #tpu.memory_space<vmem>>, %arg5: memref<1x8x1xf32, #tpu.memory_space<vmem>>, %arg6: memref<1x1x8xf32, #tpu.memory_space<vmem>>, %arg7: memref<32x32xf32, #tpu.memory_space<vmem>>, %arg8: memref<1x8x8xf32, #tpu.memory_space<vmem>>, %arg9: memref<1x8x32xf32, #tpu.memory_space<vmem>>) attributes {dimension_semantics = [#tpu.dimension_semantics<parallel>, #tpu.dimension_semantics<parallel>, #tpu.dimension_semantics<arbitrary>], iteration_bounds = array<i64: 2, 1, 1>, scalar_prefetch = 0 : i64, scratch_operands = 1 : i64, tpu.core_type = #tpu.core_type<tc>, window_params = [{transform_indices = @transform_0, window_bounds = array<i64: 1, 8, 32>}, {transform_indices = @transform_1, window_bounds = array<i64: 1, 8, 32>}, {transform_indices = @transform_2, window_bounds = array<i64: 1, 8, 1>}, {transform_indices = @transform_3, window_bounds = array<i64: 1, 1, 8>}, {pipeline_mode = #tpu.pipeline_mode<synchronous>, transform_indices = @transform_4, window_bounds = array<i64: 32, 32>}, {transform_indices = @transform_5, window_bounds = array<i64: 1, 8, 8>}]} {
    %c0_i32 = arith.constant 0 : i32
    %0 = arith.cmpi eq, %arg2, %c0_i32 : i32
    %1 = arith.extui %0 : i1 to i32
    %c0_i32_0 = arith.constant 0 : i32
    %2 = arith.cmpi ne, %1, %c0_i32_0 : i32
    scf.if %2 {
      %c0_15 = arith.constant 0 : index
      %c0_16 = arith.constant 0 : index
      %c0_17 = arith.constant 0 : index
      %13 = vector.load %arg3[%c0_15, %c0_16, %c0_17] : memref<1x8x32xf32, #tpu.memory_space<vmem>>, vector<1x8x32xf32>
      %14 = vector.shape_cast %13 : vector<1x8x32xf32> to vector<8x32xf32>
      %c0_18 = arith.constant 0 : index
      %c0_19 = arith.constant 0 : index
      %15 = vector.load %arg7[%c0_18, %c0_19] : memref<32x32xf32, #tpu.memory_space<vmem>>, vector<32x32xf32>
      %cst_20 = arith.constant dense<0.000000e+00> : vector<8x32xf32>
      %16 = tpu.matmul %14, %15, %cst_20 {dimension_numbers = #tpu.dot_dimension_numbers<[1], [0], [0], [1], [0, 0, 1, 1], [], []>} : vector<8x32xf32>, vector<32x32xf32>, vector<8x32xf32> -> vector<8x32xf32>
      %17 = vector.shape_cast %16 : vector<8x32xf32> to vector<1x8x32xf32>
      %c0_21 = arith.constant 0 : index
      %c0_22 = arith.constant 0 : index
      %c0_23 = arith.constant 0 : index
      %18 = vector.load %arg9[%c0_21, %c0_22, %c0_23] : memref<1x8x32xf32, #tpu.memory_space<vmem>>, vector<1x8x32xf32>
      tpu.vector_store %arg9[%c0_21, %c0_22, %c0_23], %17 {strides = array<i32>} : memref<1x8x32xf32, #tpu.memory_space<vmem>>, vector<1x8x32xf32>,
    } else {
    }
    %c0 = arith.constant 0 : index
    %c0_1 = arith.constant 0 : index
    %c0_2 = arith.constant 0 : index
    %3 = vector.load %arg9[%c0, %c0_1, %c0_2] : memref<1x8x32xf32, #tpu.memory_space<vmem>>, vector<1x8x32xf32>
    %c0_3 = arith.constant 0 : index
    %c0_4 = arith.constant 0 : index
    %c0_5 = arith.constant 0 : index
    %4 = vector.load %arg4[%c0_3, %c0_4, %c0_5] : memref<1x8x32xf32, #tpu.memory_space<vmem>>, vector<1x8x32xf32>
    "tpu.trace_start"() <{level = 10 : i32, message = "bqd,bkd->bqk"}> : () -> ()
    %cst = arith.constant dense<0.000000e+00> : vector<1x8x8xf32>
    %5 = tpu.matmul %3, %4, %cst {dimension_numbers = #tpu.dot_dimension_numbers<[2], [2], [1], [1], [0, 0, 0, 1, 1, 1], [0], [0]>} : vector<1x8x32xf32>, vector<1x8x32xf32>, vector<1x8x8xf32> -> vector<1x8x8xf32>
    "tpu.trace_stop"() : () -> ()
    %c0_6 = arith.constant 0 : index
    %c0_7 = arith.constant 0 : index
    %c0_8 = arith.constant 0 : index
    %6 = vector.load %arg5[%c0_6, %c0_7, %c0_8] : memref<1x8x1xf32, #tpu.memory_space<vmem>>, vector<1x8x1xf32>
    %7 = vector.broadcast %6 : vector<1x8x1xf32> to vector<1x8x8xf32>
    %8 = arith.addf %5, %7 : vector<1x8x8xf32>
    %c0_9 = arith.constant 0 : index
    %c0_10 = arith.constant 0 : index
    %c0_11 = arith.constant 0 : index
    %9 = vector.load %arg6[%c0_9, %c0_10, %c0_11] : memref<1x1x8xf32, #tpu.memory_space<vmem>>, vector<1x1x8xf32>
    %10 = vector.broadcast %9 : vector<1x1x8xf32> to vector<1x8x8xf32>
    %11 = arith.addf %8, %10 : vector<1x8x8xf32>
    %c0_12 = arith.constant 0 : index
    %c0_13 = arith.constant 0 : index
    %c0_14 = arith.constant 0 : index
    %12 = vector.load %arg8[%c0_12, %c0_13, %c0_14] : memref<1x8x8xf32, #tpu.memory_space<vmem>>, vector<1x8x8xf32>
    tpu.vector_store %arg8[%c0_12, %c0_13, %c0_14], %11 {strides = array<i32>} : memref<1x8x8xf32, #tpu.memory_space<vmem>>, vector<1x8x8xf32>,
    return
  }
  func.func @transform_0(%arg0: i32, %arg1: i32, %arg2: i32) -> (i32, i32, i32) {
    %c0_i32 = arith.constant 0 : i32
    %c0_i32_0 = arith.constant 0 : i32
    return %arg0, %arg1, %c0_i32 : i32, i32, i32
  }
  func.func @transform_1(%arg0: i32, %arg1: i32, %arg2: i32) -> (i32, i32, i32) {
    %c0_i32 = arith.constant 0 : i32
    %c0_i32_0 = arith.constant 0 : i32
    return %arg0, %arg2, %c0_i32 : i32, i32, i32
  }
  func.func @transform_2(%arg0: i32, %arg1: i32, %arg2: i32) -> (i32, i32, i32) {
    %c0_i32 = arith.constant 0 : i32
    %c0_i32_0 = arith.constant 0 : i32
    return %arg0, %arg1, %c0_i32 : i32, i32, i32
  }
  func.func @transform_3(%arg0: i32, %arg1: i32, %arg2: i32) -> (i32, i32, i32) {
    %c0_i32 = arith.constant 0 : i32
    %c0_i32_0 = arith.constant 0 : i32
    return %arg0, %c0_i32, %arg2 : i32, i32, i32
  }
  func.func @transform_4(%arg0: i32, %arg1: i32, %arg2: i32) -> (i32, i32) {
    %c0_i32 = arith.constant 0 : i32
    %c0_i32_0 = arith.constant 0 : i32
    %c0_i32_1 = arith.constant 0 : i32
    return %c0_i32, %c0_i32_0 : i32, i32
  }
  func.func @transform_5(%arg0: i32, %arg1: i32, %arg2: i32) -> (i32, i32, i32) {
    %c0_i32 = arith.constant 0 : i32
    return %arg0, %arg1, %arg2 : i32, i32, i32
  }
}

</mosaic_0001>

<llo_original>
// kernel: tpu_custom_call.1
$region0: #{tpu_custom_call.1}
  #allocation0 [shape = 'u32[]', space=smem, size = 0x4, offset = 0x4, fixed_abs, tag = 'smem constant byte address 0x4 - core index']
  #allocation1 [shape = 'u32[72,128]{1,0:T(1,128)}', space=vmem, size = 0x9000, scoped, tag = 'internal scratch']
  #allocation2 [shape = 'f32[1,8,32]{2,1,0:T(8,128)}', space=vmem, size = 0x1000, scoped, tag = 'scratch operand']
  %s0 = inlined_call_operand.vmem [shape: f32[2,8,32], index: 0, kind: input, shape index: {}]
  %s1 = inlined_call_operand.hbm [shape: f32[2,8,32], index: 1, kind: input, shape index: {}]
  %s2 = inlined_call_operand.vmem [shape: f32[2,8,1], index: 2, kind: input, shape index: {}]
  %s3 = inlined_call_operand.vmem [shape: f32[2,1,8], index: 3, kind: input, shape index: {}]
  %s4 = inlined_call_operand.hbm [shape: f32[32,32], index: 4, kind: input, shape index: {}]
  %s5 = inlined_call_operand.hbm [shape: f32[2,8,8], index: 5, kind: output, shape index: {}]
  %s6 = sld [smem:[#allocation0]]
  $region65: #{tpu_custom_call.1} parent=0
    _
  %s8 = ssub.s32 1, %s6
  %s9 = scalar_select 0, %s8, %s6
  $region1: #{tpu_custom_call.1} parent=0
    #allocation3 [shape = 'u8[8192]{0}', space=vmem, size = 0x2000, scoped, tag = 'input window, operand 1']
    #allocation4 [shape = 's32[2]{0}', space=sflag, size = 0x8, scoped, tag = 'scoped memory for tpu_custom_call.1']
    #allocation5 [shape = 's32[2]{0}', space=sflag, size = 0x8, scoped, tag = 'scoped memory for tpu_custom_call.1']
    #allocation6 [shape = 'u8[16384]{0}', space=vmem, size = 0x4000, scoped, tag = 'input window, operand 4, single buffered']
    #allocation7 [shape = 's32[1]{0}', space=sflag, size = 0x4, scoped, tag = 'scoped memory for tpu_custom_call.1']
    #allocation8 [shape = 'u8[8192]{0}', space=vmem, size = 0x2000, scoped, tag = 'output window, operand 0']
    %10 = vsyncpa [#allocation4], 0
    %s11 = scalar_lea.sflag [#allocation4], 1
    %12 = vsyncpa %s11, 0
    %13 = vsyncpa [#allocation7], 0
    %14 = vsyncpa [#allocation5], 0
    %s15 = scalar_lea.sflag [#allocation5], 1
    %16 = vsyncpa %s15, 0
    loop: start=0, step=1, limit=4
    $region2: #{tpu_custom_call.1} parent=1 // loop_pre_header
      _
    $region3: #{tpu_custom_call.1} parent=1 // loop_header
      %s18 = sphi 0, %s22
      %p19 = scmp.ge.s32.totalorder %s18, 4
      %s25 = sphi 0, %s44
      %s26 = sphi 0, %s40
      %s27 = sphi 0, %s36
      %s28 = sphi 0, %s25
      %s29 = sphi 0, %s26
      %s30 = sphi 0, %s27
      %s31 = sphi 0, %s28
      %s32 = sphi 0, %s29
      %s33 = sphi 0, %s30
      %s49 = sphi 0, %s51
      %s52 = sphi 0, %s49
      %s53 = sphi 0, %s52
      %s69 = sphi 0, %s53
      %s77 = sphi 0, %s79
      %s80 = sphi 0, %s77
      %s81 = sphi 0, %s80
      %s97 = sphi 0, %s81
      %s105 = sphi 0, %s107
      %s108 = sphi 0, %s105
      %s109 = sphi 0, %s108
      %s125 = sphi 0, %s109
      %s133 = sphi 0, %s135
      %s136 = sphi 0, %s133
      %s137 = sphi 0, %s136
      %s153 = sphi 0, %s137
      %s157 = sphi 0, %s157
      %s159 = sphi 0, %s157
      %s160 = sphi 0, %s159
      %s174 = sphi 0, %s160
      %s184 = sphi 0, %s186
      %s187 = sphi 0, %s184
      %s188 = sphi 0, %s187
      %s204 = sphi 0, %s188
    $region4: #{tpu_custom_call.1} parent=1 // loop_header_branch
      %21 = sbr.rel (%p19) target = $region8
    $region5: #{tpu_custom_call.1} parent=1 // loop_body
      %s23 = ssub.s32 %s18, 1
      %s24 = ssub.s32 %s18, 2
      %s34 = sadd.s32 1, %s27
      %p35 = scmp.ge.s32.totalorder %s34, 1
      %s36 = scalar_select %p35, 0, %s34
      %s37 = sadd.s32 1, %s26
      %s38 = scalar_select %p35, %s37, %s26
      %p39 = scmp.ge.s32.totalorder %s38, 1
      %s40 = scalar_select %p39, 0, %s38
      %s41 = sadd.s32 1, %s25
      %s42 = scalar_select %p39, %s41, %s25
      %p43 = scmp.ge.s32.totalorder %s42, 2
      %s44 = scalar_select %p43, 0, %s42
      %s45 = ssub.s32 %s25, %s44
      %s46 = ssub.s32 %s26, %s40
      %s47 = sor.u32 %s45, %s46
      %p48 = scmp.eq.s32.totalorder %s47, 0
      %s50 = sadd.s32 %s49, 1
      %s51 = scalar_select %p48, %s49, %s50
      %p54 = pneg %p48
      %p55 = scmp.eq.s32.totalorder %s18, 1
      %p56 = por %p54, %p55
      %p57 = scmp.ne.s32.totalorder %s49, %s52
      %p58 = scmp.eq.s32.totalorder %s18, 0
      %p59 = por %p57, %p58
      %p60 = scmp.ne.s32.totalorder %s49, %s52
      %p61 = scmp.eq.s32.totalorder %s23, 1
      %p62 = por %p60, %p61
      %p63 = scmp.ne.s32.totalorder %s52, %s53
      %p64 = scmp.eq.s32.totalorder %s23, 0
      %p65 = por %p63, %p64
      %p66 = scmp.ne.s32.totalorder %s52, %s53
      %p67 = scmp.eq.s32.totalorder %s24, 1
      %p68 = por %p66, %p67
      %p70 = scmp.ne.s32.totalorder %s53, %s69
      %p71 = scmp.eq.s32.totalorder %s24, 0
      %p72 = por %p70, %p71
      %s73 = ssub.s32 %s25, %s44
      %s74 = ssub.s32 %s27, %s36
      %s75 = sor.u32 %s73, %s74
      %p76 = scmp.eq.s32.totalorder %s75, 0
      %s78 = sadd.s32 %s77, 1
      %s79 = scalar_select %p76, %s77, %s78
      %p82 = pneg %p76
      %p83 = scmp.eq.s32.totalorder %s18, 1
      %p84 = por %p82, %p83
      %p85 = scmp.ne.s32.totalorder %s77, %s80
      %p86 = scmp.eq.s32.totalorder %s18, 0
      %p87 = por %p85, %p86
      %p88 = scmp.ne.s32.totalorder %s77, %s80
      %p89 = scmp.eq.s32.totalorder %s23, 1
      %p90 = por %p88, %p89
      %p91 = scmp.ne.s32.totalorder %s80, %s81
      %p92 = scmp.eq.s32.totalorder %s23, 0
      %p93 = por %p91, %p92
      %p94 = scmp.ne.s32.totalorder %s80, %s81
      %p95 = scmp.eq.s32.totalorder %s24, 1
      %p96 = por %p94, %p95
      %p98 = scmp.ne.s32.totalorder %s81, %s97
      %p99 = scmp.eq.s32.totalorder %s24, 0
      %p100 = por %p98, %p99
      %s101 = ssub.s32 %s25, %s44
      %s102 = ssub.s32 %s26, %s40
      %s103 = sor.u32 %s101, %s102
      %p104 = scmp.eq.s32.totalorder %s103, 0
      %s106 = sadd.s32 %s105, 1
      %s107 = scalar_select %p104, %s105, %s106
      %p110 = pneg %p104
      %p111 = scmp.eq.s32.totalorder %s18, 1
      %p112 = por %p110, %p111
      %p113 = scmp.ne.s32.totalorder %s105, %s108
      %p114 = scmp.eq.s32.totalorder %s18, 0
      %p115 = por %p113, %p114
      %p116 = scmp.ne.s32.totalorder %s105, %s108
      %p117 = scmp.eq.s32.totalorder %s23, 1
      %p118 = por %p116, %p117
      %p119 = scmp.ne.s32.totalorder %s108, %s109
      %p120 = scmp.eq.s32.totalorder %s23, 0
      %p121 = por %p119, %p120
      %p122 = scmp.ne.s32.totalorder %s108, %s109
      %p123 = scmp.eq.s32.totalorder %s24, 1
      %p124 = por %p122, %p123
      %p126 = scmp.ne.s32.totalorder %s109, %s125
      %p127 = scmp.eq.s32.totalorder %s24, 0
      %p128 = por %p126, %p127
      %s129 = ssub.s32 %s25, %s44
      %s130 = ssub.s32 %s27, %s36
      %s131 = sor.u32 %s129, %s130
      %p132 = scmp.eq.s32.totalorder %s131, 0
      %s134 = sadd.s32 %s133, 1
      %s135 = scalar_select %p132, %s133, %s134
      %p138 = pneg %p132
      %p139 = scmp.eq.s32.totalorder %s18, 1
      %p140 = por %p138, %p139
      %p141 = scmp.ne.s32.totalorder %s133, %s136
      %p142 = scmp.eq.s32.totalorder %s18, 0
      %p143 = por %p141, %p142
      %p144 = scmp.ne.s32.totalorder %s133, %s136
      %p145 = scmp.eq.s32.totalorder %s23, 1
      %p146 = por %p144, %p145
      %p147 = scmp.ne.s32.totalorder %s136, %s137
      %p148 = scmp.eq.s32.totalorder %s23, 0
      %p149 = por %p147, %p148
      %p150 = scmp.ne.s32.totalorder %s136, %s137
      %p151 = scmp.eq.s32.totalorder %s24, 1
      %p152 = por %p150, %p151
      %p154 = scmp.ne.s32.totalorder %s137, %s153
      %p155 = scmp.eq.s32.totalorder %s24, 0
      %p156 = por %p154, %p155
      %s158 = sadd.s32 %s157, 1
      %p161 = scmp.eq.s32.totalorder %s18, 1
      %p162 = scmp.ne.s32.totalorder %s157, %s159
      %p163 = scmp.eq.s32.totalorder %s18, 0
      %p164 = por %p162, %p163
      %p165 = scmp.ne.s32.totalorder %s157, %s159
      %p166 = scmp.eq.s32.totalorder %s23, 1
      %p167 = por %p165, %p166
      %p168 = scmp.ne.s32.totalorder %s159, %s160
      %p169 = scmp.eq.s32.totalorder %s23, 0
      %p170 = por %p168, %p169
      %p171 = scmp.ne.s32.totalorder %s159, %s160
      %p172 = scmp.eq.s32.totalorder %s24, 1
      %p173 = por %p171, %p172
      %p175 = scmp.ne.s32.totalorder %s160, %s174
      %p176 = scmp.eq.s32.totalorder %s24, 0
      %p177 = por %p175, %p176
      %s178 = ssub.s32 %s25, %s44
      %s179 = ssub.s32 %s26, %s40
      %s180 = sor.u32 %s178, %s179
      %s181 = ssub.s32 %s27, %s36
      %s182 = sor.u32 %s180, %s181
      %p183 = scmp.eq.s32.totalorder %s182, 0
      %s185 = sadd.s32 %s184, 1
      %s186 = scalar_select %p183, %s184, %s185
      %p189 = pneg %p183
      %p190 = scmp.eq.s32.totalorder %s18, 1
      %p191 = por %p189, %p190
      %p192 = scmp.ne.s32.totalorder %s184, %s187
      %p193 = scmp.eq.s32.totalorder %s18, 0
      %p194 = por %p192, %p193
      %p195 = scmp.ne.s32.totalorder %s184, %s187
      %p196 = scmp.eq.s32.totalorder %s23, 1
      %p197 = por %p195, %p196
      %p198 = scmp.ne.s32.totalorder %s187, %s188
      %p199 = scmp.eq.s32.totalorder %s23, 0
      %p200 = por %p198, %p199
      %p201 = scmp.ne.s32.totalorder %s187, %s188
      %p202 = scmp.eq.s32.totalorder %s24, 1
      %p203 = por %p201, %p202
      %p205 = scmp.ne.s32.totalorder %s188, %s204
      %p206 = scmp.eq.s32.totalorder %s24, 0
      %p207 = por %p205, %p206
      %p208 = scmp.le.s32.totalorder 1, %s18
      %p209 = scmp.lt.s32.totalorder %s18, 3
      %p210 = pnand %p208, %p209
      %p211 = pneg %p210
      // Predicated region
      $region9: #{tpu_custom_call.1} parent=5 // pred_check
        _
      $region10: #{tpu_custom_call.1} parent=5 // pred_check_branch
        %213 = sbr.rel (%p210) target = $region12
      $region11: #{tpu_custom_call.1} parent=5 // pred_region
        %s214 = ssub.s32 %s18, 1
        // Predicated region
        $region13: #{tpu_custom_call.1} parent=11 // pred_check
          %p215 = pneg %p170
        $region14: #{tpu_custom_call.1} parent=11 // pred_check_branch
          %217 = sbr.rel (%p215) target = $region16
        $region15: #{tpu_custom_call.1} parent=11 // pred_region
          %219 = vsyncadd [#allocation7], 0
          %s220 = sshll.u32 %s4, 4
          %s221 = int_to_ptr.hbm [resolvable:$true] %s220
          %s222 = sshll.u32 [#allocation6], 4
          %s223 = int_to_ptr.vmem [resolvable:$true] %s222
          %228 = dma.hbm_to_vmem [thread:$0]  %s221, 512, %s223, [#allocation7], 128, 128, 8
        $region16: #{tpu_custom_call.1} parent=11 // pred_fallthru
          _
      $region12: #{tpu_custom_call.1} parent=5 // pred_fallthru
        _
      %p229 = scmp.lt.s32.totalorder %s18, 2
      // Predicated region
      $region17: #{tpu_custom_call.1} parent=5 // pred_check
        %p230 = pneg %p229
      $region18: #{tpu_custom_call.1} parent=5 // pred_check_branch
        %232 = sbr.rel (%p230) target = $region20
      $region19: #{tpu_custom_call.1} parent=5 // pred_region
        // Predicated region
        $region21: #{tpu_custom_call.1} parent=19 // pred_check
          %p233 = pneg %p59
        $region22: #{tpu_custom_call.1} parent=19 // pred_check_branch
          %235 = sbr.rel (%p233) target = $region24
        $region23: #{tpu_custom_call.1} parent=19 // pred_region
          %p236 = scmp.lt.s32.totalorder %s25, 1
          %s237 = scalar_select %p236, %s25, 1
          %p238 = scmp.lt.s32.totalorder %s26, 0
          %s239 = scalar_select %p238, %s26, 0
          %s240 = sadd.s32 %s239, %s237
          %s241 = smul.addr %s240, 8
          %s242 = scalar_lea.vmem %s0, %s241
        $region24: #{tpu_custom_call.1} parent=19 // pred_fallthru
          _
        // Predicated region
        $region25: #{tpu_custom_call.1} parent=19 // pred_check
          %p243 = pneg %p87
        $region26: #{tpu_custom_call.1} parent=19 // pred_check_branch
          %245 = sbr.rel (%p243) target = $region28
        $region27: #{tpu_custom_call.1} parent=19 // pred_region
          %s246 = sand.u32 %s77, 1
          %s247 = scalar_lea.sflag [#allocation4], %s246
          %s248 = sand.u32 %s77, 1
          %s249 = smul.addr %s248, 8
          %s250 = scalar_lea.vmem [#allocation3], %s249
          %252 = vsyncadd %s247, 0
          %s253 = sadd.s32 %s27, %s25
          %s254 = smul.addr %s253, 8
          %s255 = scalar_lea.hbm %s1, %s254
          %s257 = sshll.u32 %s255, 4
          %s258 = int_to_ptr.hbm [resolvable:$true] %s257
          %s259 = sshll.u32 %s250, 4
          %s260 = int_to_ptr.vmem [resolvable:$true] %s259
          %262 = dma.hbm_to_vmem [thread:$0]  %s258, 128, %s260, %s247
        $region28: #{tpu_custom_call.1} parent=19 // pred_fallthru
          _
        // Predicated region
        $region29: #{tpu_custom_call.1} parent=19 // pred_check
          %p263 = pneg %p115
        $region30: #{tpu_custom_call.1} parent=19 // pred_check_branch
          %265 = sbr.rel (%p263) target = $region32
        $region31: #{tpu_custom_call.1} parent=19 // pred_region
          %p266 = scmp.lt.s32.totalorder %s25, 1
          %s267 = scalar_select %p266, %s25, 1
          %p268 = scmp.lt.s32.totalorder %s26, 0
          %s269 = scalar_select %p268, %s26, 0
          %s270 = sadd.s32 %s269, %s267
          %s271 = smul.addr %s270, 8
          %s272 = scalar_lea.vmem %s2, %s271
        $region32: #{tpu_custom_call.1} parent=19 // pred_fallthru
          _
        // Predicated region
        $region33: #{tpu_custom_call.1} parent=19 // pred_check
          %p273 = pneg %p143
        $region34: #{tpu_custom_call.1} parent=19 // pred_check_branch
          %275 = sbr.rel (%p273) target = $region36
        $region35: #{tpu_custom_call.1} parent=19 // pred_region
          %p276 = scmp.lt.s32.totalorder %s25, 1
          %s277 = scalar_select %p276, %s25, 1
          %p278 = scmp.lt.s32.totalorder %s27, 0
          %s279 = scalar_select %p278, %s27, 0
          %s280 = sadd.s32 %s279, %s277
          %s281 = scalar_lea.vmem %s3, %s280
        $region36: #{tpu_custom_call.1} parent=19 // pred_fallthru
          _
      $region20: #{tpu_custom_call.1} parent=5 // pred_fallthru
        _
      %p282 = scmp.le.s32.totalorder 1, %s18
      %p283 = scmp.lt.s32.totalorder %s18, 3
      %p284 = pnand %p282, %p283
      %p285 = pneg %p284
      // Predicated region
      $region37: #{tpu_custom_call.1} parent=5 // pred_check
        _
      $region38: #{tpu_custom_call.1} parent=5 // pred_check_branch
        %287 = sbr.rel (%p284) target = $region40
      $region39: #{tpu_custom_call.1} parent=5 // pred_region
        %s288 = ssub.s32 %s18, 1
        %s289 = sand.u32 %s80, 1
        %s290 = scalar_lea.sflag [#allocation4], %s289
        %s291 = sand.u32 %s80, 1
        %s292 = smul.addr %s291, 8
        %s293 = scalar_lea.vmem [#allocation3], %s292
        // Predicated region
        $region41: #{tpu_custom_call.1} parent=39 // pred_check
          %p294 = pneg %p93
        $region42: #{tpu_custom_call.1} parent=39 // pred_check_branch
          %296 = sbr.rel (%p294) target = $region44
        $region43: #{tpu_custom_call.1} parent=39 // pred_region
          %298 = dma.done %s290, 128
        $region44: #{tpu_custom_call.1} parent=39 // pred_fallthru
          _
        // Predicated region
        $region45: #{tpu_custom_call.1} parent=39 // pred_check
          %p299 = pneg %p170
        $region46: #{tpu_custom_call.1} parent=39 // pred_check_branch
          %301 = sbr.rel (%p299) target = $region48
        $region47: #{tpu_custom_call.1} parent=39 // pred_region
          %303 = dma.done [#allocation7], 512
        $region48: #{tpu_custom_call.1} parent=39 // pred_fallthru
          _
        %p304 = scmp.lt.s32.totalorder %s28, 1
        %s305 = scalar_select %p304, %s28, 1
        %p306 = scmp.lt.s32.totalorder %s29, 0
        %s307 = scalar_select %p306, %s29, 0
        %s308 = sadd.s32 %s307, %s305
        %s309 = smul.addr %s308, 8
        %s310 = scalar_lea.vmem %s0, %s309
        %p311 = pneg %p65
        %p312 = pneg %p62
        %s313 = sand.u32 %s80, 1
        %s314 = scalar_lea.sflag [#allocation4], %s313
        %s315 = sand.u32 %s80, 1
        %s316 = smul.addr %s315, 8
        %s317 = scalar_lea.vmem [#allocation3], %s316
        %p318 = pneg %p93
        %p319 = pneg %p90
        %p320 = scmp.lt.s32.totalorder %s28, 1
        %s321 = scalar_select %p320, %s28, 1
        %p322 = scmp.lt.s32.totalorder %s29, 0
        %s323 = scalar_select %p322, %s29, 0
        %s324 = sadd.s32 %s323, %s321
        %s325 = smul.addr %s324, 8
        %s326 = scalar_lea.vmem %s2, %s325
        %p327 = pneg %p121
        %p328 = pneg %p118
        %p329 = scmp.lt.s32.totalorder %s28, 1
        %s330 = scalar_select %p329, %s28, 1
        %p331 = scmp.lt.s32.totalorder %s30, 0
        %s332 = scalar_select %p331, %s30, 0
        %s333 = sadd.s32 %s332, %s330
        %s334 = scalar_lea.vmem %s3, %s333
        %p335 = pneg %p149
        %p336 = pneg %p146
        %p337 = pneg %p170
        %p338 = pneg %p167
        %p339 = pneg %p200
        %p340 = pneg %p197
        %s341 = sand.u32 %s187, 1
        %s342 = scalar_lea.sflag [#allocation5], %s341
        %s343 = sand.u32 %s187, 1
        %s344 = smul.addr %s343, 8
        %s345 = scalar_lea.vmem [#allocation8], %s344
        %p346 = scmp.lt.s32.totalorder %s28, 1
        %s347 = scalar_select %p346, %s28, 1
        %p348 = scmp.lt.s32.totalorder %s29, 0
        %s349 = scalar_select %p348, %s29, 0
        %s350 = sadd.s32 %s349, %s347
        %s351 = smul.addr %s350, 8
        %s352 = scalar_lea.vmem %s0, %s351
        %p353 = scmp.lt.s32.totalorder %s28, 1
        %s354 = scalar_select %p353, %s28, 1
        %p355 = scmp.lt.s32.totalorder %s29, 0
        %s356 = scalar_select %p355, %s29, 0
        %s357 = sadd.s32 %s356, %s354
        %s358 = smul.addr %s357, 8
        %s359 = scalar_lea.vmem %s2, %s358
        %p360 = scmp.lt.s32.totalorder %s28, 1
        %s361 = scalar_select %p360, %s28, 1
        %p362 = scmp.lt.s32.totalorder %s30, 0
        %s363 = scalar_select %p362, %s30, 0
        %s364 = sadd.s32 %s363, %s361
        %s365 = scalar_lea.vmem %s3, %s364
        %p366 = scmp.eq.s32.totalorder %s30, 0
        // Predicated region
        $region49: #{tpu_custom_call.1} parent=39 // pred_check
          %p367 = pneg %p366
        $region50: #{tpu_custom_call.1} parent=39 // pred_check_branch
          %369 = sbr.rel (%p367) target = $region52
        $region51: #{tpu_custom_call.1} parent=39 // pred_region
          %v370 = vld [vmem:[%s352] sm:$0xff]
          %v371 = vld [vmem:[#allocation6] sm:$0xff]
          %v372 = vld [vmem:[#allocation6 + $0x8] sm:$0xff]
          %v373 = vld [vmem:[#allocation6 + $0x10] sm:$0xff]
          %v374 = vld [vmem:[#allocation6 + $0x18] sm:$0xff]
          %vm375 = vcmask 261120
          %v377 = vsel %vm375, %v370, 0
          %379 = vmatpush.msra.mxu0 0.0
          %380 = vmatpush.msra.mxu0 0.0
          %381 = vmatpush.msra.mxu0 0.0
          %382 = vmatpush.msra.mxu0 0.0
          %383 = vmatpush.msra.mxu0 0.0
          %384 = vmatpush.msra.mxu0 0.0
          %385 = vmatpush.msra.mxu0 0.0
          %386 = vmatpush.msra.mxu0 0.0
          %387 = vmatpush.msra.mxu0 0.0
          %388 = vmatpush.msra.mxu0 0.0
          %389 = vmatpush.msra.mxu0 0.0
          %390 = vmatpush.msra.mxu0 0.0
          %391 = vmatpush.msra.mxu0 %v374
          %392 = vmatpush.msra.mxu0 %v373
          %393 = vmatpush.msra.mxu0 %v372
          %394 = vmatpush.msra.mxu0 %v371
          %395 = vmatmul.f32.gmra.mxu0 %v377
          %v396 = vpop.f32.mrf.mxu0
          %v397 = vadd.f32 0.0, %v396
          %398 = vdwg.mxu0
          %399 = vst.msk [vmem:[#allocation2] sm:$0xff] %vm375, %v397
        $region52: #{tpu_custom_call.1} parent=39 // pred_fallthru
          _
        %v400 = vld [vmem:[#allocation2] sm:$0xff]
        %v401 = vld [vmem:[%s293] sm:$0xff]
        %v402 = vld [vmem:[%s359] sm:$0xff]
        %404 = vset.pattern.permute.xlu0 0
        %405 = vperm.xlu0 %404, %v402
        %v406 = vpop.permute.xlu0 %405
        %vm408 = vcmask 261120
        %v410 = vsel %vm408, %v400, 0
        %v413 = vsel %vm408, %v401, 0
        %415 = vmatpush.xpose.msra.mxu0 0.0
        %416 = vmatpush.xpose.msra.mxu0 0.0
        %417 = vmatpush.xpose.msra.mxu0 0.0
        %418 = vmatpush.xpose.msra.mxu0 0.0
        %419 = vmatpush.xpose.msra.mxu0 0.0
        %420 = vmatpush.xpose.msra.mxu0 0.0
        %421 = vmatpush.xpose.msra.mxu0 0.0
        %422 = vmatpush.xpose.msra.mxu0 0.0
        %423 = vmatpush.xpose.msra.mxu0 0.0
        %424 = vmatpush.xpose.msra.mxu0 0.0
        %425 = vmatpush.xpose.msra.mxu0 0.0
        %426 = vmatpush.xpose.msra.mxu0 0.0
        %427 = vmatpush.xpose.msra.mxu0 0.0
        %428 = vmatpush.xpose.msra.mxu0 0.0
        %429 = vmatpush.xpose.msra.mxu0 0.0
        %430 = vmatpush.xpose.msra.mxu0 %v413
        %431 = vmatmul.f32.gmra.mxu0 %v410
        %v432 = vpop.f32.mrf.mxu0
        %v433 = vadd.f32 %v406, %v432
        %434 = vdwg.mxu0
        %v435 = vld [vmem:[%s365] sm:$0x1]
        %v437 = vperm.slane %v435, 0
        %v439 = vadd.f32 %v433, %v437
        %vm440 = vcmask 64512
        %441 = vst.msk [vmem:[%s345] sm:$0xff] %vm440, %v439
        %s442 = sand.u32 %s187, 1
        %s443 = scalar_lea.sflag [#allocation5], %s442
        %s444 = sand.u32 %s187, 1
        %s445 = smul.addr %s444, 8
        %s446 = scalar_lea.vmem [#allocation8], %s445
        // Predicated region
        $region53: #{tpu_custom_call.1} parent=39 // pred_check
          %p447 = pneg %p197
        $region54: #{tpu_custom_call.1} parent=39 // pred_check_branch
          %449 = sbr.rel (%p447) target = $region56
        $region55: #{tpu_custom_call.1} parent=39 // pred_region
          %451 = vsyncadd %s443, 0
          %s452 = sadd.s32 %s30, %s29
          %s453 = sadd.s32 %s452, %s28
          %s454 = smul.addr %s453, 8
          %s455 = scalar_lea.hbm %s5, %s454
          %s457 = sshll.u32 %s446, 4
          %s458 = int_to_ptr.vmem [resolvable:$true] %s457
          %s459 = sshll.u32 %s455, 4
          %s460 = int_to_ptr.hbm [resolvable:$true] %s459
          %462 = dma.vmem_to_hbm [thread:$0]  %s458, 128, %s460, %s443
        $region56: #{tpu_custom_call.1} parent=39 // pred_fallthru
          _
      $region40: #{tpu_custom_call.1} parent=5 // pred_fallthru
        _
      %p463 = scmp.le.s32.totalorder 2, %s18
      // Predicated region
      $region57: #{tpu_custom_call.1} parent=5 // pred_check
        %p464 = pneg %p463
      $region58: #{tpu_custom_call.1} parent=5 // pred_check_branch
        %466 = sbr.rel (%p464) target = $region60
      $region59: #{tpu_custom_call.1} parent=5 // pred_region
        %s467 = ssub.s32 %s18, 2
        // Predicated region
        $region61: #{tpu_custom_call.1} parent=59 // pred_check
          %p468 = pneg %p203
        $region62: #{tpu_custom_call.1} parent=59 // pred_check_branch
          %470 = sbr.rel (%p468) target = $region64
        $region63: #{tpu_custom_call.1} parent=59 // pred_region
          %s471 = sand.u32 %s188, 1
          %s472 = scalar_lea.sflag [#allocation5], %s471
          %s473 = sand.u32 %s188, 1
          %s474 = smul.addr %s473, 8
          %s475 = scalar_lea.vmem [#allocation8], %s474
          %477 = dma.done %s472, 128
        $region64: #{tpu_custom_call.1} parent=59 // pred_fallthru
          _
      $region60: #{tpu_custom_call.1} parent=5 // pred_fallthru
        _
    $region6: #{tpu_custom_call.1} parent=1 // loop_footer
      %s22 = sadd.s32 1, %s18
    $region7: #{tpu_custom_call.1} parent=1 // loop_footer_branch
      %17 = sbr.rel target = $region3
    $region8: #{tpu_custom_call.1} parent=1 // loop_exit
      _
    %478 = vsyncpa [#allocation4], 1
    %s479 = scalar_lea.sflag [#allocation4], 1
    %480 = vsyncpa %s479, 1
    %481 = vsyncpa [#allocation7], 1
    %482 = vsyncpa [#allocation5], 1
    %s483 = scalar_lea.sflag [#allocation5], 1
    %484 = vsyncpa %s483, 1

</llo_original>
